<compile_context>
chip_gen: v7x
topology: tpu7x:2x2x1
jax: 0.10.0
libtpu: 0.0.40
codegen_flags: <defaults>
</compile_context>

<pallas_src>
import functools

import jax
import jax.numpy as jnp
from jax.experimental import pallas as pl
from jax.experimental.pallas import tpu as pltpu

_LANE = 128
_SUBLANE = 8
# Target bytes for the double-buffered input tile.  Conservative enough for
# v7x's 32 MiB default scoped VMEM (64 MiB physical) as well as v5e/v6e.
_VMEM_INPUT_BUDGET = 8 * 1024 * 1024


def _round_up(x, m):
    return ((x + m - 1) // m) * m


def _chunk_sum(sq_ref, rows, n_chunks):
    """Sum the first `n_chunks` 128-lane chunks of sq_ref into a (rows,128) f32.

    Keeps the hot loop as lane-aligned VPU adds (no per-step cross-lane XLU
    reduce, no narrow (rows,1) vector ops); the single cross-lane reduction is
    deferred to the finalize branch.
    """
    zero = jnp.zeros((rows, _LANE), jnp.float32)
    if n_chunks <= 0:
        return zero
    if n_chunks <= 8:           # small: static unroll
        acc = zero
        for j in range(n_chunks):
            acc = acc + sq_ref[:, j * _LANE:(j + 1) * _LANE].astype(jnp.float32)
        return acc

    def body(j, acc):
        off = pl.multiple_of(j * _LANE, _LANE)
        return acc + sq_ref[:, pl.ds(off, _LANE)].astype(jnp.float32)

    return jax.lax.fori_loop(0, n_chunks, body, zero, unroll=8)


def _per_sample_sum_kernel(sq_ref, out_ref, acc_ref, *, inv_tf, n_chunks,
                           tail_chunks, tail_rem, mask_tail):
    """Accumulate per-sample sums of the flattened squared-error field.

    sq_ref : (tb, tn)  block of the [B, T*F] squared errors (f32 or bf16).
    out_ref: (tb, 1)   f32 per-sample means (written at the last column tile).
    acc_ref: (tb, 128) f32 VMEM accumulator, persistent across the column axis.
    """
    ci = pl.program_id(1)
    last = pl.num_programs(1) - 1
    rows = acc_ref.shape[0]

    @pl.when(ci == 0)
    def _init():
        acc_ref[...] = jnp.zeros_like(acc_ref)

    if not mask_tail:
        acc_ref[...] += _chunk_sum(sq_ref, rows, n_chunks)
    else:
        # Only the last column tile overlaps the ragged end of each row; every
        # other tile takes the unmasked fast path.
        @pl.when(ci != last)
        def _full_tile():
            acc_ref[...] += _chunk_sum(sq_ref, rows, n_chunks)

        @pl.when(ci == last)
        def _ragged_tile():
            if tail_chunks > 0:                       # aligned prefix, unmasked
                acc_ref[...] += _chunk_sum(sq_ref, rows, tail_chunks)
            if tail_rem > 0:                          # final <128-lane chunk
                base = tail_chunks * _LANE
                chunk = sq_ref[:, base:base + _LANE].astype(jnp.float32)
                lane = jax.lax.broadcasted_iota(jnp.int32, chunk.shape, 1)
                acc_ref[...] += jnp.where(lane < tail_rem, chunk, 0.0)

    @pl.when(ci == last)
    def _finalize():
        out_ref[...] = (jnp.sum(acc_ref[...], axis=-1, keepdims=True)
                        * inv_tf).astype(out_ref.dtype)


@functools.partial(jax.jit, static_argnames=("reduction", "max_tile_cols",
                                              "precompute_dtype",
                                              "allow_input_fusion",
                                              "deep_buffering"))
def mse_loss_spectrogram(estimated_stft, clean_stft, *, reduction="mean",
                         max_tile_cols=None, precompute_dtype="float32",
                         allow_input_fusion=False, deep_buffering=False):
    """MSE loss for complex spectrograms, matching the PyTorch module.

    precompute_dtype: "float32" (exact) or "bfloat16" (cuts HBM traffic
        ~24 -> ~20 B/elem; loss shifts by ~1e-3 relative, accumulation stays f32).
    allow_input_fusion: let XLA fuse the |clean - est|^2 producer into the
        Pallas input pipeline (~24 -> ~16 B/elem) if the backend supports it.
    deep_buffering: request 3-deep input pipelining for small-block grids.
    """
    if estimated_stft.ndim != 3 or clean_stft.ndim != 3:
        raise ValueError("Inputs must have shape [batch_size, T, F]")
    if not (jnp.iscomplexobj(estimated_stft) and jnp.iscomplexobj(clean_stft)):
        raise ValueError("Inputs must be complex tensors (complex64)")
    if estimated_stft.shape != clean_stft.shape:
        raise ValueError("estimated_stft and clean_stft must have equal shapes")
    if reduction not in ("mean", "sum", "none"):
        raise ValueError(f"Unknown reduction: {reduction}")

    b, t, f = estimated_stft.shape
    nf = t * f
    sq_dtype = jnp.bfloat16 if precompute_dtype == "bfloat16" else jnp.float32
    itemsize = jnp.dtype(sq_dtype).itemsize

    # Single fused element-wise HBM pass (under jit): |clean - est|^2,
    # flattened per sample so the kernel's lane axis is dense and contiguous.
    d = clean_stft - estimated_stft
    sq = jnp.real(d) * jnp.real(d) + jnp.imag(d) * jnp.imag(d)
    sq = sq.astype(sq_dtype).reshape(b, nf)

    # ---- tiling -------------------------------------------------------------
    nf_pad = _round_up(nf, _LANE)

    # Column (reduction) tile: multiple of 128 lanes, capped at the padded row
    # length (whole row per step when it fits) and at a per-8-row ceiling so
    # even the minimum batch tile stays within the VMEM budget.
    tn_cap = max(_LANE, (_VMEM_INPUT_BUDGET // (2 * _SUBLANE * itemsize))
                 // _LANE * _LANE)
    tn = min(nf_pad, tn_cap)
    if max_tile_cols is not None:
        tn = min(tn, max(_LANE, (max_tile_cols // _LANE) * _LANE))
    tn = max(_LANE, tn)
    nc = pl.cdiv(nf, tn)

    # Batch tile: grow it to fill the double-buffered VMEM budget (fewer grid
    # steps amortize per-step pipeline overhead), but keep it a multiple of 8
    # and keep >= 2 batch tiles when b > 8 so the 'parallel' axis can feed
    # both v7x TensorCores.
    if b <= _SUBLANE:
        tb = b
    else:
        tb_budget = max(_SUBLANE, (_VMEM_INPUT_BUDGET // (2 * tn * itemsize))
                        // _SUBLANE * _SUBLANE)
        tb_two_tiles = _round_up(pl.cdiv(b, 2), _SUBLANE)   # keep nb >= 2
        tb = min(_round_up(b, _SUBLANE), tb_budget, tb_two_tiles)
    nb = pl.cdiv(b, tb)
    # TODO(synk): when b <= 8 (nb == 1) on v7x, a 2-way split-reduction over
    # column halves would let both TensorCores contribute; not implemented.

    mask_tail = (nf % tn) != 0
    tail = nf - (nc - 1) * tn                 # valid columns in the last tile

    kernel = functools.partial(
        _per_sample_sum_kernel,
        inv_tf=1.0 / float(nf),
        n_chunks=tn // _LANE,
        tail_chunks=tail // _LANE,
        tail_rem=tail % _LANE,
        mask_tail=mask_tail,
    )

    index_map = lambda bi, ci: (bi, ci)
    in_spec = pl.BlockSpec((tb, tn), index_map)
    block_bytes = tb * tn * itemsize
    if (deep_buffering and nc >= 2 and block_bytes <= (1 << 20)
            and hasattr(pl, "Buffered")):
        try:  # 3-deep input pipelining hides DMA issue latency for tiny blocks
            in_spec = pl.BlockSpec((tb, tn), index_map,
                                   pipeline_mode=pl.Buffered(3))
        except TypeError:
            pass  # BlockSpec without pipeline_mode: keep double buffering

    compiler_params = pltpu.CompilerParams(
        dimension_semantics=("parallel", "arbitrary"),
        vmem_limit_bytes=32 * 1024 * 1024,
        allow_input_fusion=[True] if allow_input_fusion else None,
    )
    cost = pl.CostEstimate(flops=b * nf, transcendentals=0,
                           bytes_accessed=b * nf * itemsize + b * 4)

    per_sample = pl.pallas_call(
        kernel,
        out_shape=jax.ShapeDtypeStruct((b, 1), jnp.float32),
        grid=(nb, nc),                        # reduction (column) axis last
        in_specs=[in_spec],
        out_specs=pl.BlockSpec((tb, 1), lambda bi, ci: (bi, 0)),
        scratch_shapes=[pltpu.VMEM((tb, _LANE), jnp.float32)],
        compiler_params=compiler_params,
        cost_estimate=cost,
    )(sq)[:, 0]

    if reduction == "none":
        return per_sample
    if reduction == "mean":
        return jnp.mean(per_sample)
    # 'sum': sum over batch of the per-sample means (module spec).
    return jnp.sum(per_sample)


if __name__ == "__main__":
    root = jax.random.PRNGKey(0)
    k1, k2, k3 = jax.random.split(root, 3)

    def make_pair(key, shape):
        a, bb, c, dd = jax.random.split(key, 4)
        est = jax.lax.complex(jax.random.normal(a, shape, jnp.float32),
                              jax.random.normal(bb, shape, jnp.float32))
        cln = jax.lax.complex(jax.random.normal(c, shape, jnp.float32),
                              jax.random.normal(dd, shape, jnp.float32))
        return est, cln

    def reference(est, cln):
        return jnp.mean(jnp.abs(cln - est) ** 2, axis=(1, 2))

    # 1) Small shape consistent with the module: [batch, T, F] complex64.
    B, T, F = 2, 8, 16
    est, clean = make_pair(k1, (B, T, F))
    ref_ps = reference(est, clean)

    loss = jax.block_until_ready(
        mse_loss_spectrogram(est, clean, reduction="mean"))
    assert jnp.allclose(loss, jnp.mean(ref_ps), rtol=1e-5, atol=1e-6)

    per_sample = jax.block_until_ready(
        mse_loss_spectrogram(est, clean, reduction="none"))
    assert per_sample.shape == (B,)
    assert jnp.allclose(per_sample, ref_ps, rtol=1e-5, atol=1e-6)

    total = jax.block_until_ready(
        mse_loss_spectrogram(est, clean, reduction="sum"))
    assert jnp.allclose(total, jnp.sum(ref_ps), rtol=1e-5, atol=1e-6)

    # 2) Ragged lane tail + ragged batch tail + multi-tile grid (forced
    #    128-lane column tiles): masked-tail branch + persistent accumulator.
    B2, T2, F2 = 10, 13, 21                 # T*F = 273 -> 3 column tiles
    est2, clean2 = make_pair(k2, (B2, T2, F2))
    ref2 = reference(est2, clean2)
    ps2 = jax.block_until_ready(
        mse_loss_spectrogram(est2, clean2, reduction="none", max_tile_cols=128))
    assert ps2.shape == (B2,)
    assert jnp.allclose(ps2, ref2, rtol=1e-5, atol=1e-6), (ps2, ref2)

    # 3) Larger batch: exercises the grown batch tile (tb=16, nb=2) and the
    #    aligned-prefix + masked-remainder split inside one column tile.
    B3, T3, F3 = 24, 4, 40                  # T*F = 160
    est3, clean3 = make_pair(k3, (B3, T3, F3))
    ref3 = reference(est3, clean3)
    ps3 = jax.block_until_ready(
        mse_loss_spectrogram(est3, clean3, reduction="none"))
    assert ps3.shape == (B3,)
    assert jnp.allclose(ps3, ref3, rtol=1e-5, atol=1e-6), (ps3, ref3)

    # 4) bfloat16 squared-error intermediate (~24 -> ~20 B/elem HBM traffic);
    #    accumulation stays f32, value shifts by ~1e-3 relative.
    ps_bf16 = jax.block_until_ready(
        mse_loss_spectrogram(est3, clean3, reduction="none",
                             precompute_dtype="bfloat16"))
    assert jnp.allclose(ps_bf16, ref3, rtol=2e-2, atol=1e-3)

    # 5) Optional fast paths, attempted but never allowed to break the run:
    #    producer fusion into the Pallas input pipeline (~24 -> ~16 B/elem)
    #    and 3-deep input buffering for small-block grids.
    for kwargs in ({"allow_input_fusion": True},
                   {"max_tile_cols": 128, "deep_buffering": True}):
        try:
            ps_opt = jax.block_until_ready(
                mse_loss_spectrogram(est2, clean2, reduction="none", **kwargs))
            assert jnp.allclose(ps_opt, ref2, rtol=1e-5, atol=1e-6)
        except Exception:  # noqa: BLE001 — fall back to the default path
            pass

    print("KERNEL_OK")
</pallas_src>

<mosaic_0001>
module attributes {stable_mosaic.version = 11 : i64} {
  func.func @_per_sample_sum_kernel(%arg0: i32, %arg1: i32, %arg2: memref<2x128xf32, #tpu.memory_space<vmem>>, %arg3: memref<2x1xf32, #tpu.memory_space<vmem>>, %arg4: memref<2x128xf32, #tpu.memory_space<vmem>>) attributes {dimension_semantics = [#tpu.dimension_semantics<parallel>, #tpu.dimension_semantics<arbitrary>], iteration_bounds = array<i64: 1, 1>, scalar_prefetch = 0 : i64, scratch_operands = 1 : i64, tpu.core_type = #tpu.core_type<tc>, window_params = [{transform_indices = @transform_0, window_bounds = array<i64: 2, 128>}, {transform_indices = @transform_1, window_bounds = array<i64: 2, 1>}]} {
    %c0_i32 = arith.constant 0 : i32
    %0 = arith.cmpi eq, %arg1, %c0_i32 : i32
    %1 = arith.extui %0 : i1 to i32
    %c0_i32_0 = arith.constant 0 : i32
    %2 = arith.cmpi ne, %1, %c0_i32_0 : i32
    scf.if %2 {
      %cst_8 = arith.constant 0.000000e+00 : f32
      %12 = vector.broadcast %cst_8 : f32 to vector<2x128xf32>
      %c0_9 = arith.constant 0 : index
      %c0_10 = arith.constant 0 : index
      %13 = vector.load %arg4[%c0_9, %c0_10] : memref<2x128xf32, #tpu.memory_space<vmem>>, vector<2x128xf32>
      tpu.vector_store %arg4[%c0_9, %c0_10], %12 {strides = array<i32>} : memref<2x128xf32, #tpu.memory_space<vmem>>, vector<2x128xf32>,
    } else {
    }
    %c0 = arith.constant 0 : index
    %c0_1 = arith.constant 0 : index
    %3 = vector.load %arg4[%c0, %c0_1] : memref<2x128xf32, #tpu.memory_space<vmem>>, vector<2x128xf32>
    %cst = arith.constant 0.000000e+00 : f32
    %4 = vector.broadcast %cst : f32 to vector<2x128xf32>
    %c0_2 = arith.constant 0 : index
    %c0_3 = arith.constant 0 : index
    %5 = vector.load %arg2[%c0_2, %c0_3] : memref<2x128xf32, #tpu.memory_space<vmem>>, vector<2x128xf32>
    %6 = arith.addf %4, %5 : vector<2x128xf32>
    %7 = arith.addf %3, %6 : vector<2x128xf32>
    %c0_4 = arith.constant 0 : index
    %c0_5 = arith.constant 0 : index
    %8 = vector.load %arg4[%c0_4, %c0_5] : memref<2x128xf32, #tpu.memory_space<vmem>>, vector<2x128xf32>
    tpu.vector_store %arg4[%c0_4, %c0_5], %7 {strides = array<i32>} : memref<2x128xf32, #tpu.memory_space<vmem>>, vector<2x128xf32>,
    %c0_i32_6 = arith.constant 0 : i32
    %9 = arith.cmpi eq, %arg1, %c0_i32_6 : i32
    %10 = arith.extui %9 : i1 to i32
    %c0_i32_7 = arith.constant 0 : i32
    %11 = arith.cmpi ne, %10, %c0_i32_7 : i32
    scf.if %11 {
      %c0_8 = arith.constant 0 : index
      %c0_9 = arith.constant 0 : index
      %12 = vector.load %arg4[%c0_8, %c0_9] : memref<2x128xf32, #tpu.memory_space<vmem>>, vector<2x128xf32>
      %cst_10 = arith.constant dense<0.000000e+00> : vector<2xf32>
      %13 = vector.multi_reduction <add>, %12, %cst_10 [1] : vector<2x128xf32> to vector<2xf32>
      %14 = vector.shape_cast %13 : vector<2xf32> to vector<2x1xf32>
      %cst_11 = arith.constant 7.812500e-03 : f32
      %15 = vector.broadcast %cst_11 : f32 to vector<2x1xf32>
      %16 = arith.mulf %14, %15 : vector<2x1xf32>
      %c0_12 = arith.constant 0 : index
      %c0_13 = arith.constant 0 : index
      %17 = vector.load %arg3[%c0_12, %c0_13] : memref<2x1xf32, #tpu.memory_space<vmem>>, vector<2x1xf32>
      tpu.vector_store %arg3[%c0_12, %c0_13], %16 {strides = array<i32>} : memref<2x1xf32, #tpu.memory_space<vmem>>, vector<2x1xf32>,
    } else {
    }
    return
  }
  func.func @transform_0(%arg0: i32, %arg1: i32) -> (i32, i32) {
    %c0_i32 = arith.constant 0 : i32
    return %arg0, %arg1 : i32, i32
  }
  func.func @transform_1(%arg0: i32, %arg1: i32) -> (i32, i32) {
    %c0_i32 = arith.constant 0 : i32
    %c0_i32_0 = arith.constant 0 : i32
    return %arg0, %c0_i32 : i32, i32
  }
}

</mosaic_0001>

<llo_original>
// kernel: custom-call.1
$region0: #{custom-call.1}
  %s0 = inlined_call_operand.hbm [shape: c64[2,8,16], index: 0, kind: input, shape index: {}]
  %s1 = inlined_call_operand.vmem [shape: f32[2,8,16], index: 1, kind: output, shape index: {}]
  %s2 = scalar_lea.hbm %s0, 256
  $region1: #{custom-call.1} parent=0
    #allocation0 [shape = 's32[1]{0}', space=sflag, size = 0x4, scoped, tag = 'scoped memory for custom-call.1']
    %3 = vsyncpa [#allocation0], 0
    %s4 = sshll.u32 %s1, 4
    %s5 = int_to_ptr.vmem [resolvable:$true] %s4
    %7 = dma.hbm_to_vmem [thread:$0]  %s2, 256, %s5, [#allocation0]
    %8 = dma.done [#allocation0], 256
    %9 = vsyncpa [#allocation0], 1

// kernel: custom-call
$region0: #{custom-call}
  %s0 = inlined_call_operand.hbm [shape: c64[2,8,16], index: 0, kind: input, shape index: {}]
  %s1 = inlined_call_operand.vmem [shape: f32[2,8,16], index: 1, kind: output, shape index: {}]
  $region1: #{custom-call} parent=0
    #allocation0 [shape = 's32[1]{0}', space=sflag, size = 0x4, scoped, tag = 'scoped memory for custom-call']
    %2 = vsyncpa [#allocation0], 0
    %s3 = sshll.u32 %s1, 4
    %s4 = int_to_ptr.vmem [resolvable:$true] %s3
    %6 = dma.hbm_to_vmem [thread:$0]  %s0, 256, %s4, [#allocation0]
    %7 = dma.done [#allocation0], 256
    %8 = vsyncpa [#allocation0], 1

// kernel: mse_loss_spectrogram.1
$region0: #{mse_loss_spectrogram.1}
  #allocation0 [shape = 'u32[]', space=smem, size = 0x4, offset = 0x4, fixed_abs, tag = 'smem constant byte address 0x4 - core index']
  #allocation1 [shape = 'u32[144,128]{1,0:T(1,128)}', space=vmem, size = 0x12000, scoped, tag = 'internal scratch']
  #allocation2 [shape = 'f32[2,128]{1,0:T(2,128)}', space=vmem, size = 0x400, scoped, tag = 'scratch operand']
  %s0 = inlined_call_operand.vmem [shape: f32[2,128], index: 0, kind: input, shape index: {}]
  %s1 = inlined_call_operand.vmem [shape: f32[2,1], index: 1, kind: output, shape index: {}]
  %s2 = sld [smem:[#allocation0]]
  $region22: #{mse_loss_spectrogram.1} parent=0
    _
  %s4 = ssub.s32 1, %s2
  %s5 = scalar_select 0, %s4, %s2
  // Predicated region
  $region2: #{mse_loss_spectrogram.1} parent=0 // pred_check
    _
  $region3: #{mse_loss_spectrogram.1} parent=0 // pred_check_branch
    %7 = sbr.rel (0) target = $region5
  $region4: #{mse_loss_spectrogram.1} parent=0 // pred_region
    _
  $region5: #{mse_loss_spectrogram.1} parent=0 // pred_fallthru
    _
  %p8 = scmp.eq.s32.totalorder 0, 0
  // Predicated region
  $region6: #{mse_loss_spectrogram.1} parent=0 // pred_check
    %p9 = pneg %p8
  $region7: #{mse_loss_spectrogram.1} parent=0 // pred_check_branch
    %11 = sbr.rel (%p9) target = $region9
  $region8: #{mse_loss_spectrogram.1} parent=0 // pred_region
    %12 = vst [vmem:[#allocation2] sm:$0x3] 0.0
  $region9: #{mse_loss_spectrogram.1} parent=0 // pred_fallthru
    _
  %v13 = vld [vmem:[#allocation2] sm:$0x3]
  %v14 = vld [vmem:[%s0] sm:$0x3]
  %v15 = vadd.f32 %v14, 0.0
  %v16 = vadd.f32 %v13, %v15
  %17 = vst [vmem:[#allocation2] sm:$0x3] %v16
  // Predicated region
  $region10: #{mse_loss_spectrogram.1} parent=0 // pred_check
    %p18 = pneg %p8
  $region11: #{mse_loss_spectrogram.1} parent=0 // pred_check_branch
    %20 = sbr.rel (%p18) target = $region13
  $region12: #{mse_loss_spectrogram.1} parent=0 // pred_region
    %v21 = vld [vmem:[#allocation2] sm:$0x3]
    %vm22 = vcmask 1041408
    %v23 = vsel %vm22, %v21, 0.0
    %24 = vadd.xlane.f32.xlu0 %v23
    %v25 = vpop.xlane.xlu0 %24
    %v26 = vmul.f32 %v25, 0.0078125
    %vm27 = vcmask 1024
    %28 = vst.msk [vmem:[%s1] sm:$0x3] %vm27, %v26
  $region13: #{mse_loss_spectrogram.1} parent=0 // pred_fallthru
    _
  // Predicated region
  $region14: #{mse_loss_spectrogram.1} parent=0 // pred_check
    _
  $region15: #{mse_loss_spectrogram.1} parent=0 // pred_check_branch
    %30 = sbr.rel (0) target = $region17
  $region16: #{mse_loss_spectrogram.1} parent=0 // pred_region
    _
  $region17: #{mse_loss_spectrogram.1} parent=0 // pred_fallthru
    _
  // Predicated region
  $region18: #{mse_loss_spectrogram.1} parent=0 // pred_check
    _
  $region19: #{mse_loss_spectrogram.1} parent=0 // pred_check_branch
    %32 = sbr.rel (0) target = $region21
  $region20: #{mse_loss_spectrogram.1} parent=0 // pred_region
    _
  $region21: #{mse_loss_spectrogram.1} parent=0 // pred_fallthru
    _

</llo_original>
